<compile_context>
chip_gen: v7x
topology: tpu7x:2x2x1
jax: 0.10.0
libtpu: 0.0.40
codegen_flags: <defaults>
</compile_context>

<pallas_src>
import functools

import jax
import jax.numpy as jnp
from jax.experimental import pallas as pl
from jax.experimental.pallas import tpu as pltpu

_LANES = 128
_SUBLANES = 8
_MAX_BLOCK_ROWS = 2048  # (2048, 128) f32 = 1 MiB per input block


def _partial_loss_kernel(*refs, use_l1, rows, block_rows, npairs):
    """Per-block partial sums for `npairs` (pred, target) pairs.

    refs = [p0, t0, p1, t1, ...] inputs of shape (block_rows, 128),
    followed by `npairs` output refs of shape (1, 8, 128).
    """
    in_refs = refs[: 2 * npairs]
    out_refs = refs[2 * npairs:]
    i = pl.program_id(0)
    ragged = (rows % block_rows) != 0  # static
    for k in range(npairs):
        p = in_refs[2 * k][...].astype(jnp.float32)
        t = in_refs[2 * k + 1][...].astype(jnp.float32)
        d = p - t
        v = jnp.abs(d) if use_l1 else d * d
        if ragged:
            # Zero out rows of the (possibly out-of-bounds) last block.
            row_ids = i * block_rows + jax.lax.broadcasted_iota(
                jnp.int32, v.shape, 0)
            v = jnp.where(row_ids < rows, v, 0.0)
        # (block_rows, 128) -> (block_rows/8, 8, 128) -> sum over vreg rows:
        # pure VPU adds, one (8,128) partial per block.
        partial = v.reshape(block_rows // _SUBLANES, _SUBLANES, _LANES).sum(
            axis=0)
        out_refs[k][0] = partial


def _to_rows128(x):
    """Flatten to (rows, 128). Free reshape when size % 128 == 0."""
    flat = x.reshape(-1)
    n = flat.shape[0]
    rem = n % _LANES
    if rem:
        # Rare fallback (size not a multiple of 128): pad pred and target
        # identically so the padded diff contributes exactly zero.
        flat = jnp.pad(flat, (0, _LANES - rem))
    return flat.reshape(-1, _LANES)


def _partial_sums(use_l1, pairs):
    """Sum of |p-t| or (p-t)^2 over all elements, per pair, via one kernel."""
    rows = pairs[0][0].shape[0]
    npairs = len(pairs)
    block_rows = min(
        _MAX_BLOCK_ROWS,
        max(_SUBLANES, ((rows + _SUBLANES - 1) // _SUBLANES) * _SUBLANES),
    )
    num_blocks = pl.cdiv(rows, block_rows)

    kernel = functools.partial(
        _partial_loss_kernel,
        use_l1=use_l1,
        rows=rows,
        block_rows=block_rows,
        npairs=npairs,
    )

    in_spec = pl.BlockSpec((block_rows, _LANES), lambda i: (i, 0))
    out_spec = pl.BlockSpec((1, _SUBLANES, _LANES), lambda i: (i, 0, 0))

    total_elems = sum(int(p.size) for p, _ in pairs)
    cost = pl.CostEstimate(
        flops=3 * total_elems,
        transcendentals=0,
        bytes_accessed=2 * 4 * total_elems
        + npairs * num_blocks * _SUBLANES * _LANES * 4,
    )

    partials = pl.pallas_call(
        kernel,
        out_shape=[
            jax.ShapeDtypeStruct((num_blocks, _SUBLANES, _LANES), jnp.float32)
        ] * npairs,
        grid_spec=pltpu.PrefetchScalarGridSpec(
            num_scalar_prefetch=0,
            grid=(num_blocks,),
            in_specs=[in_spec] * (2 * npairs),
            out_specs=[out_spec] * npairs,
        ),
        compiler_params=pltpu.CompilerParams(
            dimension_semantics=("parallel",)),
        cost_estimate=cost,
    )(*[a for pair in pairs for a in pair])

    if not isinstance(partials, (list, tuple)):
        partials = (partials,)
    # Tiny final reduction (num_blocks x 8 x 128 per pair) done by XLA.
    return tuple(jnp.sum(p) for p in partials)


def recon_loss(pred_e, pred_h, h, e, l1orl2="l1"):
    """Pallas implementation of Recon_Loss.forward(pred_e, pred_h, h, e)."""
    use_l1 = l1orl2 == "l1"
    n_e = jnp.float32(pred_e.size)
    n_h = jnp.float32(pred_h.size)
    pe, ee = _to_rows128(pred_e), _to_rows128(e)
    ph, hh = _to_rows128(pred_h), _to_rows128(h)
    if pe.shape[0] == ph.shape[0]:
        # Fused path: one pallas_call streams both loss terms.
        s_e, s_h = _partial_sums(use_l1, [(pe, ee), (ph, hh)])
    else:
        (s_e,) = _partial_sums(use_l1, [(pe, ee)])
        (s_h,) = _partial_sums(use_l1, [(ph, hh)])
    return s_e / n_e + s_h / n_h


def _reference(pred_e, pred_h, h, e, l1orl2="l1"):
    if l1orl2 == "l1":
        return jnp.mean(jnp.abs(pred_e - e)) + jnp.mean(jnp.abs(pred_h - h))
    return jnp.mean((pred_e - e) ** 2) + jnp.mean((pred_h - h) ** 2)


if __name__ == "__main__":
    key = jax.random.PRNGKey(0)
    k1, k2, k3, k4 = jax.random.split(key, 4)
    shape = (2, 4, 16, 16)  # NCHW
    pred_e = jax.random.normal(k1, shape, dtype=jnp.float32)
    pred_h = jax.random.normal(k2, shape, dtype=jnp.float32)
    h = jax.random.normal(k3, shape, dtype=jnp.float32)
    e = jax.random.normal(k4, shape, dtype=jnp.float32)

    ok = True
    for mode in ("l1", "l2"):
        out = jax.block_until_ready(recon_loss(pred_e, pred_h, h, e, mode))
        ref = jax.block_until_ready(_reference(pred_e, pred_h, h, e, mode))
        if not jnp.allclose(out, ref, rtol=1e-5, atol=1e-5):
            ok = False
            print(f"MISMATCH ({mode}): pallas={out} ref={ref}")

    if ok:
        print("KERNEL_OK")
</pallas_src>

<mosaic_0001>
module attributes {stable_mosaic.version = 11 : i64} {
  func.func @_partial_loss_kernel(%arg0: i32, %arg1: memref<16x128xf32, #tpu.memory_space<vmem>>, %arg2: memref<16x128xf32, #tpu.memory_space<vmem>>, %arg3: memref<16x128xf32, #tpu.memory_space<vmem>>, %arg4: memref<16x128xf32, #tpu.memory_space<vmem>>, %arg5: memref<1x8x128xf32, #tpu.memory_space<vmem>>, %arg6: memref<1x8x128xf32, #tpu.memory_space<vmem>>) attributes {dimension_semantics = [#tpu.dimension_semantics<parallel>], iteration_bounds = array<i64: 1>, scalar_prefetch = 0 : i64, scratch_operands = 0 : i64, tpu.core_type = #tpu.core_type<tc>, window_params = [{transform_indices = @transform_0, window_bounds = array<i64: 16, 128>}, {transform_indices = @transform_1, window_bounds = array<i64: 16, 128>}, {transform_indices = @transform_2, window_bounds = array<i64: 16, 128>}, {transform_indices = @transform_3, window_bounds = array<i64: 16, 128>}, {transform_indices = @transform_4, window_bounds = array<i64: 1, 8, 128>}, {transform_indices = @transform_5, window_bounds = array<i64: 1, 8, 128>}]} {
    %c0 = arith.constant 0 : index
    %c0_0 = arith.constant 0 : index
    %0 = vector.load %arg1[%c0, %c0_0] : memref<16x128xf32, #tpu.memory_space<vmem>>, vector<16x128xf32>
    %c0_1 = arith.constant 0 : index
    %c0_2 = arith.constant 0 : index
    %1 = vector.load %arg2[%c0_1, %c0_2] : memref<16x128xf32, #tpu.memory_space<vmem>>, vector<16x128xf32>
    %2 = arith.subf %0, %1 : vector<16x128xf32>
    %3 = math.absf %2 : vector<16x128xf32>
    %4 = vector.shape_cast %3 : vector<16x128xf32> to vector<2x8x128xf32>
    %cst = arith.constant dense<0.000000e+00> : vector<8x128xf32>
    %5 = vector.multi_reduction <add>, %4, %cst [0] : vector<2x8x128xf32> to vector<8x128xf32>
    %c0_3 = arith.constant 0 : index
    %c0_4 = arith.constant 0 : index
    %c0_5 = arith.constant 0 : index
    %6 = vector.load %arg5[%c0_3, %c0_4, %c0_5] : memref<1x8x128xf32, #tpu.memory_space<vmem>>, vector<1x8x128xf32>
    %7 = vector.shape_cast %6 : vector<1x8x128xf32> to vector<8x128xf32>
    %8 = vector.shape_cast %5 : vector<8x128xf32> to vector<1x8x128xf32>
    tpu.vector_store %arg5[%c0_3, %c0_4, %c0_5], %8 {strides = array<i32>} : memref<1x8x128xf32, #tpu.memory_space<vmem>>, vector<1x8x128xf32>,
    %c0_6 = arith.constant 0 : index
    %c0_7 = arith.constant 0 : index
    %9 = vector.load %arg3[%c0_6, %c0_7] : memref<16x128xf32, #tpu.memory_space<vmem>>, vector<16x128xf32>
    %c0_8 = arith.constant 0 : index
    %c0_9 = arith.constant 0 : index
    %10 = vector.load %arg4[%c0_8, %c0_9] : memref<16x128xf32, #tpu.memory_space<vmem>>, vector<16x128xf32>
    %11 = arith.subf %9, %10 : vector<16x128xf32>
    %12 = math.absf %11 : vector<16x128xf32>
    %13 = vector.shape_cast %12 : vector<16x128xf32> to vector<2x8x128xf32>
    %cst_10 = arith.constant dense<0.000000e+00> : vector<8x128xf32>
    %14 = vector.multi_reduction <add>, %13, %cst_10 [0] : vector<2x8x128xf32> to vector<8x128xf32>
    %c0_11 = arith.constant 0 : index
    %c0_12 = arith.constant 0 : index
    %c0_13 = arith.constant 0 : index
    %15 = vector.load %arg6[%c0_11, %c0_12, %c0_13] : memref<1x8x128xf32, #tpu.memory_space<vmem>>, vector<1x8x128xf32>
    %16 = vector.shape_cast %15 : vector<1x8x128xf32> to vector<8x128xf32>
    %17 = vector.shape_cast %14 : vector<8x128xf32> to vector<1x8x128xf32>
    tpu.vector_store %arg6[%c0_11, %c0_12, %c0_13], %17 {strides = array<i32>} : memref<1x8x128xf32, #tpu.memory_space<vmem>>, vector<1x8x128xf32>,
    return
  }
  func.func @transform_0(%arg0: i32) -> (i32, i32) {
    %c0_i32 = arith.constant 0 : i32
    %c0_i32_0 = arith.constant 0 : i32
    return %arg0, %c0_i32 : i32, i32
  }
  func.func @transform_1(%arg0: i32) -> (i32, i32) {
    %c0_i32 = arith.constant 0 : i32
    %c0_i32_0 = arith.constant 0 : i32
    return %arg0, %c0_i32 : i32, i32
  }
  func.func @transform_2(%arg0: i32) -> (i32, i32) {
    %c0_i32 = arith.constant 0 : i32
    %c0_i32_0 = arith.constant 0 : i32
    return %arg0, %c0_i32 : i32, i32
  }
  func.func @transform_3(%arg0: i32) -> (i32, i32) {
    %c0_i32 = arith.constant 0 : i32
    %c0_i32_0 = arith.constant 0 : i32
    return %arg0, %c0_i32 : i32, i32
  }
  func.func @transform_4(%arg0: i32) -> (i32, i32, i32) {
    %c0_i32 = arith.constant 0 : i32
    %c0_i32_0 = arith.constant 0 : i32
    %c0_i32_1 = arith.constant 0 : i32
    return %arg0, %c0_i32, %c0_i32_0 : i32, i32, i32
  }
  func.func @transform_5(%arg0: i32) -> (i32, i32, i32) {
    %c0_i32 = arith.constant 0 : i32
    %c0_i32_0 = arith.constant 0 : i32
    %c0_i32_1 = arith.constant 0 : i32
    return %arg0, %c0_i32, %c0_i32_0 : i32, i32, i32
  }
}

</mosaic_0001>

<llo_original>
// kernel: tpu_custom_call.1
$region0: #{tpu_custom_call.1}
  #allocation0 [shape = 'u32[]', space=smem, size = 0x4, offset = 0x4, fixed_abs, tag = 'smem constant byte address 0x4 - core index']
  #allocation1 [shape = 'u32[144,128]{1,0:T(1,128)}', space=vmem, size = 0x12000, scoped, tag = 'internal scratch']
  %s0 = inlined_call_operand.hbm [shape: f32[16,128], index: 0, kind: input, shape index: {}]
  %s1 = inlined_call_operand.hbm [shape: f32[16,128], index: 1, kind: input, shape index: {}]
  %s2 = inlined_call_operand.hbm [shape: f32[16,128], index: 2, kind: input, shape index: {}]
  %s3 = inlined_call_operand.hbm [shape: f32[16,128], index: 3, kind: input, shape index: {}]
  %s4 = inlined_call_operand.hbm [shape: f32[1,8,128], index: 4, kind: output, shape index: {0}]
  %s5 = inlined_call_operand.hbm [shape: f32[1,8,128], index: 5, kind: output, shape index: {1}]
  %6 = xla_tuple %s4, %s5
  %s7 = sld [smem:[#allocation0]]
  $region50: #{tpu_custom_call.1} parent=0
    _
  %s9 = ssub.s32 1, %s7
  %s10 = scalar_select 0, %s9, %s7
  $region1: #{tpu_custom_call.1} parent=0
    #allocation2 [shape = 'u8[8192]{0}', space=vmem, size = 0x2000, scoped, tag = 'input window, operand 0, single buffered']
    #allocation3 [shape = 's32[1]{0}', space=sflag, size = 0x4, scoped, tag = 'scoped memory for tpu_custom_call.1']
    #allocation4 [shape = 's32[1]{0}', space=sflag, size = 0x4, scoped, tag = 'scoped memory for tpu_custom_call.1']
    #allocation5 [shape = 'u8[8192]{0}', space=vmem, size = 0x2000, scoped, tag = 'input window, operand 1, single buffered']
    #allocation6 [shape = 's32[1]{0}', space=sflag, size = 0x4, scoped, tag = 'scoped memory for tpu_custom_call.1']
    #allocation7 [shape = 'u8[8192]{0}', space=vmem, size = 0x2000, scoped, tag = 'input window, operand 2, single buffered']
    #allocation8 [shape = 'u8[8192]{0}', space=vmem, size = 0x2000, scoped, tag = 'input window, operand 3, single buffered']
    #allocation9 [shape = 's32[1]{0}', space=sflag, size = 0x4, scoped, tag = 'scoped memory for tpu_custom_call.1']
    #allocation10 [shape = 'u8[4096]{0}', space=vmem, size = 0x1000, scoped, tag = 'output window, operand 0, single buffered']
    #allocation11 [shape = 'u8[4096]{0}', space=vmem, size = 0x1000, scoped, tag = 'output window, operand 1, single buffered']
    #allocation12 [shape = 's32[1]{0}', space=sflag, size = 0x4, scoped, tag = 'scoped memory for tpu_custom_call.1']
    %11 = vsyncpa [#allocation3], 0
    %12 = vsyncpa [#allocation6], 0
    %13 = vsyncpa [#allocation9], 0
    %14 = vsyncpa [#allocation4], 0
    %15 = vsyncpa [#allocation12], 0
    // Predicated region
    $region2: #{tpu_custom_call.1} parent=1 // pred_check
      _
    $region3: #{tpu_custom_call.1} parent=1 // pred_check_branch
      %17 = sbr.rel (0) target = $region5
    $region4: #{tpu_custom_call.1} parent=1 // pred_region
      %s19 = ssub.s32 256, 256
      %20 = vsyncadd [#allocation3], %s19
      %s21 = sshll.u32 [#allocation2], 4
      %s22 = int_to_ptr.vmem [resolvable:$true] %s21
      %27 = dma.hbm_to_vmem [thread:$0]  %s0, 256, %s22, [#allocation3], 128, 128, 8
    $region5: #{tpu_custom_call.1} parent=1 // pred_fallthru
      _
    // Predicated region
    $region6: #{tpu_custom_call.1} parent=1 // pred_check
      _
    $region7: #{tpu_custom_call.1} parent=1 // pred_check_branch
      %29 = sbr.rel (0) target = $region9
    $region8: #{tpu_custom_call.1} parent=1 // pred_region
      %s31 = ssub.s32 256, 256
      %32 = vsyncadd [#allocation6], %s31
      %s33 = sshll.u32 [#allocation5], 4
      %s34 = int_to_ptr.vmem [resolvable:$true] %s33
      %39 = dma.hbm_to_vmem [thread:$0]  %s1, 256, %s34, [#allocation6], 128, 128, 8
    $region9: #{tpu_custom_call.1} parent=1 // pred_fallthru
      _
    // Predicated region
    $region10: #{tpu_custom_call.1} parent=1 // pred_check
      _
    $region11: #{tpu_custom_call.1} parent=1 // pred_check_branch
      %41 = sbr.rel (0) target = $region13
    $region12: #{tpu_custom_call.1} parent=1 // pred_region
      %s43 = ssub.s32 256, 256
      %44 = vsyncadd [#allocation6], %s43
      %s45 = sshll.u32 [#allocation7], 4
      %s46 = int_to_ptr.vmem [resolvable:$true] %s45
      %51 = dma.hbm_to_vmem [thread:$0]  %s2, 256, %s46, [#allocation6], 128, 128, 8
    $region13: #{tpu_custom_call.1} parent=1 // pred_fallthru
      _
    // Predicated region
    $region14: #{tpu_custom_call.1} parent=1 // pred_check
      _
    $region15: #{tpu_custom_call.1} parent=1 // pred_check_branch
      %53 = sbr.rel (0) target = $region17
    $region16: #{tpu_custom_call.1} parent=1 // pred_region
      %s55 = ssub.s32 256, 256
      %56 = vsyncadd [#allocation9], %s55
      %s57 = sshll.u32 [#allocation8], 4
      %s58 = int_to_ptr.vmem [resolvable:$true] %s57
      %63 = dma.hbm_to_vmem [thread:$0]  %s3, 256, %s58, [#allocation9], 128, 128, 8
    $region17: #{tpu_custom_call.1} parent=1 // pred_fallthru
      _
    // Predicated region
    $region18: #{tpu_custom_call.1} parent=1 // pred_check
      _
    $region19: #{tpu_custom_call.1} parent=1 // pred_check_branch
      %65 = sbr.rel (0) target = $region21
    $region20: #{tpu_custom_call.1} parent=1 // pred_region
      %66 = dma.done [#allocation3], 256
    $region21: #{tpu_custom_call.1} parent=1 // pred_fallthru
      _
    // Predicated region
    $region22: #{tpu_custom_call.1} parent=1 // pred_check
      _
    $region23: #{tpu_custom_call.1} parent=1 // pred_check_branch
      %68 = sbr.rel (0) target = $region25
    $region24: #{tpu_custom_call.1} parent=1 // pred_region
      %69 = dma.done [#allocation6], 256
    $region25: #{tpu_custom_call.1} parent=1 // pred_fallthru
      _
    // Predicated region
    $region26: #{tpu_custom_call.1} parent=1 // pred_check
      _
    $region27: #{tpu_custom_call.1} parent=1 // pred_check_branch
      %71 = sbr.rel (0) target = $region29
    $region28: #{tpu_custom_call.1} parent=1 // pred_region
      %72 = dma.done [#allocation6], 256
    $region29: #{tpu_custom_call.1} parent=1 // pred_fallthru
      _
    // Predicated region
    $region30: #{tpu_custom_call.1} parent=1 // pred_check
      _
    $region31: #{tpu_custom_call.1} parent=1 // pred_check_branch
      %74 = sbr.rel (0) target = $region33
    $region32: #{tpu_custom_call.1} parent=1 // pred_region
      %75 = dma.done [#allocation9], 256
    $region33: #{tpu_custom_call.1} parent=1 // pred_fallthru
      _
    %v76 = vld [vmem:[#allocation2] sm:$0xff]
    %v77 = vld [vmem:[#allocation2 + $0x8] sm:$0xff]
    %v78 = vld [vmem:[#allocation5] sm:$0xff]
    %v79 = vld [vmem:[#allocation5 + $0x8] sm:$0xff]
    %v80 = vsub.f32 %v76, %v78
    %v81 = vsub.f32 %v77, %v79
    %v82 = vand.u32 2147483647, %v80
    %v83 = vand.u32 2147483647, %v81
    %v84 = vadd.f32 %v82, %v83
    %85 = vst [vmem:[#allocation10] sm:$0xff] %v84
    %v86 = vld [vmem:[#allocation7] sm:$0xff]
    %v87 = vld [vmem:[#allocation7 + $0x8] sm:$0xff]
    %v88 = vld [vmem:[#allocation8] sm:$0xff]
    %v89 = vld [vmem:[#allocation8 + $0x8] sm:$0xff]
    %v90 = vsub.f32 %v86, %v88
    %v91 = vsub.f32 %v87, %v89
    %v92 = vand.u32 2147483647, %v90
    %v93 = vand.u32 2147483647, %v91
    %v94 = vadd.f32 %v92, %v93
    %95 = vst [vmem:[#allocation11] sm:$0xff] %v94
    // Predicated region
    $region34: #{tpu_custom_call.1} parent=1 // pred_check
      _
    $region35: #{tpu_custom_call.1} parent=1 // pred_check_branch
      %97 = sbr.rel (0) target = $region37
    $region36: #{tpu_custom_call.1} parent=1 // pred_region
      %s99 = ssub.s32 128, 128
      %100 = vsyncadd [#allocation4], %s99
      %s102 = sshll.u32 [#allocation10], 4
      %s103 = int_to_ptr.vmem [resolvable:$true] %s102
      %105 = dma.vmem_to_hbm [thread:$0]  %s103, 128, %s4, [#allocation4]
    $region37: #{tpu_custom_call.1} parent=1 // pred_fallthru
      _
    // Predicated region
    $region38: #{tpu_custom_call.1} parent=1 // pred_check
      _
    $region39: #{tpu_custom_call.1} parent=1 // pred_check_branch
      %107 = sbr.rel (0) target = $region41
    $region40: #{tpu_custom_call.1} parent=1 // pred_region
      %s109 = ssub.s32 128, 128
      %110 = vsyncadd [#allocation12], %s109
      %s112 = sshll.u32 [#allocation11], 4
      %s113 = int_to_ptr.vmem [resolvable:$true] %s112
      %115 = dma.vmem_to_hbm [thread:$0]  %s113, 128, %s5, [#allocation12]
    $region41: #{tpu_custom_call.1} parent=1 // pred_fallthru
      _
    // Predicated region
    $region42: #{tpu_custom_call.1} parent=1 // pred_check
      _
    $region43: #{tpu_custom_call.1} parent=1 // pred_check_branch
      %117 = sbr.rel (0) target = $region45
    $region44: #{tpu_custom_call.1} parent=1 // pred_region
      %118 = dma.done [#allocation4], 128
    $region45: #{tpu_custom_call.1} parent=1 // pred_fallthru
      _
    // Predicated region
    $region46: #{tpu_custom_call.1} parent=1 // pred_check
      _
    $region47: #{tpu_custom_call.1} parent=1 // pred_check_branch
      %120 = sbr.rel (0) target = $region49
    $region48: #{tpu_custom_call.1} parent=1 // pred_region
      %121 = dma.done [#allocation12], 128
    $region49: #{tpu_custom_call.1} parent=1 // pred_fallthru
      _
    %122 = vsyncpa [#allocation3], 1
    %123 = vsyncpa [#allocation6], 1
    %124 = vsyncpa [#allocation9], 1
    %125 = vsyncpa [#allocation4], 1
    %126 = vsyncpa [#allocation12], 1

</llo_original>
